<compile_context>
chip_gen: v7x
topology: tpu7x:2x2x1
jax: 0.10.0
libtpu: 0.0.40
codegen_flags: <defaults>
</compile_context>

<pallas_src>
import functools

import jax
import jax.numpy as jnp
from jax.experimental import pallas as pl
from jax.experimental.pallas import tpu as pltpu


# Scoped-VMEM budget used for tile sizing and passed to the compiler.
# 32 MiB is the scoped default on v6e/v7x and safely below every chip's
# physical VMEM (v5e/v6e: 128 MiB, v7x: 64 MiB); on v5e it raises the 16 MiB
# scoped default so the head weight + larger input tiles fit.
_VMEM_LIMIT_BYTES = 32 * 1024 * 1024


def _round_up(x, m):
    return ((x + m - 1) // m) * m


def pool_head_kernel(x_ref, w_ref, b_ref, o_ref, acc_ref, *,
                     hw_total, thw, inv_hw, mask_hw):
    """Fused global-average-pool + flatten + linear head.

    x_ref:   (TN, THW, C)  NHWC feature-map tile, native dtype (e.g. bf16)
    w_ref:   (C, Kp)       bf16 head weight (transposed, K padded to 128)
    b_ref:   (1, Kp)       f32 head bias (padded)
    o_ref:   (TN, Kp)      f32 logits tile
    acc_ref: (TN, C)       f32 VMEM scratch, pooled partial sums
    """
    s = pl.program_id(1)

    @pl.when(s == 0)
    def _init():
        acc_ref[...] = jnp.zeros_like(acc_ref)

    xv = x_ref[...].astype(jnp.float32)
    if mask_hw:
        # Last HW block runs past the true spatial extent: zero those rows
        # before summing (they would otherwise contain garbage).
        hw_idx = s * thw + jax.lax.broadcasted_iota(jnp.int32, (1, thw, 1), 1)
        xv = jnp.where(hw_idx < hw_total, xv, 0.0)

    # Partial spatial sum for this HW tile, accumulated in f32.
    # C lives on the lane axis -> dense vregs.
    acc_ref[...] += jnp.sum(xv, axis=1)

    @pl.when(s == pl.num_programs(1) - 1)
    def _finalize():
        pooled = (acc_ref[...] * inv_hw).astype(w_ref.dtype)       # bf16 MXU input
        logits = jnp.dot(pooled, w_ref[...],
                         preferred_element_type=jnp.float32)       # (TN, Kp) f32
        o_ref[...] = logits + b_ref[...]


def _choose_tiles(N, HW, C, Kp, itemsize, budget):
    """Pick (TN, THW): double-buffered input + single-buffered bf16 weight must
    fit in `budget` bytes of VMEM; TN is a multiple of 8 with >= 2 N-blocks when
    possible (v7x megacore); THW is the whole spatial extent when it fits."""
    # VMEM that does not scale with TN: bf16 weight (single-buffered) + bias.
    fixed = C * Kp * 2 + 2 * (Kp * 4)

    def per_row(thw):  # per batch-row VMEM: 2x input buffer + 2x output + f32 acc
        return 2 * thw * C * itemsize + 2 * Kp * 4 + C * 4

    # HW tile: whole extent when small (collapses the reduction grid axis),
    # otherwise a multiple of 16 (bf16 sublane packing), shrunk to fit budget.
    THW = HW if HW <= 1024 else 1024
    while THW > 64 and fixed + 8 * per_row(THW) > budget:
        THW = max(64, _round_up(THW // 2, 16))

    if N <= 8:
        TN = N                               # single block; TN == full N is legal
    else:
        tn_cap = max(8, ((budget - fixed) // per_row(THW)) // 8 * 8)
        tn_half = _round_up(-(-N // 2), 8)   # at least two N blocks for megacore
        TN = max(8, min(64, tn_cap, tn_half))
    return int(TN), int(THW)


def prepare_head_params(head_w, head_b):
    """Pad / cast the nn.Linear head parameters ONCE (hoisted out of the
    per-call path).  head_w: (K, C) PyTorch layout -> bf16 (C, Kp) transposed
    weight; head_b: (K,) -> f32 (1, Kp) bias.  K is padded to a multiple of
    128 so the output store is lane-dense and unmasked."""
    K, C = head_w.shape
    Kp = _round_up(K, 128)
    w_p = jnp.pad(head_w.T.astype(jnp.bfloat16), ((0, 0), (0, Kp - K)))
    b_p = jnp.pad(head_b.astype(jnp.float32), (0, Kp - K)).reshape(1, Kp)
    return w_p, b_p


def base_model_head(feat, w_p, b_p, num_classes):
    """Global-average-pool + flatten + linear head (BaseModel.forward after the
    backbone).

    feat: (N, H, W, C) backbone feature map in NHWC (native TPU conv layout ->
          the (N, HW, C) reshape is metadata-only), any float dtype (bf16 ok).
          A 2-D (N, C) feature vector is also accepted (the PyTorch forward
          skips pooling in that case).
    w_p:  (C, Kp) bf16 transposed head weight from prepare_head_params.
    b_p:  (1, Kp) f32 padded head bias from prepare_head_params.
    Returns logits (N, num_classes) in f32.
    """
    if feat.ndim == 2:                       # backbone already emitted (N, C)
        feat = feat.reshape(feat.shape[0], 1, 1, feat.shape[1])
    N, H, W, C = feat.shape
    HW = H * W
    Kp = w_p.shape[1]
    assert w_p.shape[0] == C and b_p.shape == (1, Kp)

    # Lane-dense (N, HW, C): C is already the last axis, so this is free.
    x = feat.reshape(N, HW, C)

    budget = int(_VMEM_LIMIT_BYTES * 0.8)    # ~20% headroom for compiler scratch
    TN, THW = _choose_tiles(N, HW, C, Kp, x.dtype.itemsize, budget)
    grid = (pl.cdiv(N, TN), pl.cdiv(HW, THW))

    kernel = functools.partial(
        pool_head_kernel, hw_total=HW, thw=THW,
        inv_hw=1.0 / float(HW), mask_hw=(HW % THW) != 0)

    bytes_accessed = (x.size * x.dtype.itemsize
                      + w_p.size * w_p.dtype.itemsize
                      + b_p.size * 4 + N * Kp * 4)
    cost = pl.CostEstimate(flops=N * HW * C + 2 * N * C * Kp,
                           transcendentals=0,
                           bytes_accessed=int(bytes_accessed))

    def call(single_buffer_params):
        idx0 = lambda i, s: (0, 0)
        if single_buffer_params:
            # Grid-invariant operands: single buffer (double-buffering an
            # 8 MiB ResNet-class weight only wastes VMEM).
            w_spec = pl.BlockSpec((C, Kp), idx0, pipeline_mode=pl.Buffered(1))
            b_spec = pl.BlockSpec((1, Kp), idx0, pipeline_mode=pl.Buffered(1))
        else:
            w_spec = pl.BlockSpec((C, Kp), idx0)
            b_spec = pl.BlockSpec((1, Kp), idx0)
        return pl.pallas_call(
            kernel,
            out_shape=jax.ShapeDtypeStruct((N, Kp), jnp.float32),
            grid_spec=pltpu.PrefetchScalarGridSpec(
                num_scalar_prefetch=0,
                grid=grid,
                in_specs=[pl.BlockSpec((TN, THW, C), lambda i, s: (i, s, 0)),
                          w_spec, b_spec],
                out_specs=pl.BlockSpec((TN, Kp), lambda i, s: (i, 0)),
                scratch_shapes=[pltpu.VMEM((TN, C), jnp.float32)],
            ),
            compiler_params=pltpu.CompilerParams(
                dimension_semantics=("parallel", "arbitrary"),
                vmem_limit_bytes=_VMEM_LIMIT_BYTES),
            cost_estimate=cost,
        )(x, w_p, b_p)

    try:
        out = call(True)
    except Exception:
        # JAX version without BlockSpec(pipeline_mode=...) / Buffered(1):
        # fall back to default double-buffered specs (identical semantics).
        out = call(False)

    return out[:, :num_classes]


if __name__ == "__main__":
    # Small, deterministic example consistent with the module's forward tail:
    # a 4D backbone feature map (N, H, W, C=feature_dim) in bf16 (NHWC, the
    # native TPU layout) and a Linear head with PyTorch-layout parameters.
    N, H, W, C = 2, 8, 8, 32        # feature_dim = 32
    num_classes = 10

    key = jax.random.PRNGKey(0)
    k_feat, k_w, k_b = jax.random.split(key, 3)

    feat = jax.random.normal(k_feat, (N, H, W, C),
                             dtype=jnp.float32).astype(jnp.bfloat16)
    head_w = jax.random.normal(k_w, (num_classes, C), dtype=jnp.float32) * 0.05
    head_b = jax.random.normal(k_b, (num_classes,), dtype=jnp.float32) * 0.01

    # Parameter padding/cast happens once, outside the per-call path.
    w_p, b_p = prepare_head_params(head_w, head_b)

    logits = base_model_head(feat, w_p, b_p, num_classes)
    logits = jax.block_until_ready(logits)

    # Pure-JAX reference (same semantics as the PyTorch forward tail).
    pooled_ref = feat.astype(jnp.float32).mean(axis=(1, 2))   # pool + flatten
    ref = pooled_ref @ head_w.T + head_b                      # nn.Linear
    assert logits.shape == (N, num_classes)
    assert jnp.allclose(logits, ref, atol=2e-2, rtol=2e-2), (
        float(jnp.max(jnp.abs(logits - ref))))

    print("KERNEL_OK")
</pallas_src>

<mosaic_0001>
module attributes {stable_mosaic.version = 11 : i64} {
  func.func @pool_head_kernel(%arg0: i32, %arg1: i32, %arg2: memref<2x64x32xbf16, #tpu.memory_space<vmem>>, %arg3: memref<32x128xbf16, #tpu.memory_space<vmem>>, %arg4: memref<1x128xf32, #tpu.memory_space<vmem>>, %arg5: memref<2x128xf32, #tpu.memory_space<vmem>>, %arg6: memref<2x32xf32, #tpu.memory_space<vmem>>) attributes {dimension_semantics = [#tpu.dimension_semantics<parallel>, #tpu.dimension_semantics<arbitrary>], iteration_bounds = array<i64: 1, 1>, scalar_prefetch = 0 : i64, scratch_operands = 1 : i64, tpu.core_type = #tpu.core_type<tc>, window_params = [{transform_indices = @transform_0, window_bounds = array<i64: 2, 64, 32>}, {pipeline_mode = #tpu.pipeline_mode<synchronous>, transform_indices = @transform_1, window_bounds = array<i64: 32, 128>}, {pipeline_mode = #tpu.pipeline_mode<synchronous>, transform_indices = @transform_2, window_bounds = array<i64: 1, 128>}, {transform_indices = @transform_3, window_bounds = array<i64: 2, 128>}]} {
    %c0_i32 = arith.constant 0 : i32
    %0 = arith.cmpi eq, %arg1, %c0_i32 : i32
    %1 = arith.extui %0 : i1 to i32
    %c0_i32_0 = arith.constant 0 : i32
    %2 = arith.cmpi ne, %1, %c0_i32_0 : i32
    scf.if %2 {
      %cst_9 = arith.constant 0.000000e+00 : f32
      %12 = vector.broadcast %cst_9 : f32 to vector<2x32xf32>
      %c0_10 = arith.constant 0 : index
      %c0_11 = arith.constant 0 : index
      %13 = vector.load %arg6[%c0_10, %c0_11] : memref<2x32xf32, #tpu.memory_space<vmem>>, vector<2x32xf32>
      tpu.vector_store %arg6[%c0_10, %c0_11], %12 {strides = array<i32>} : memref<2x32xf32, #tpu.memory_space<vmem>>, vector<2x32xf32>,
    } else {
    }
    %c0 = arith.constant 0 : index
    %c0_1 = arith.constant 0 : index
    %c0_2 = arith.constant 0 : index
    %3 = vector.load %arg2[%c0, %c0_1, %c0_2] : memref<2x64x32xbf16, #tpu.memory_space<vmem>>, vector<2x64x32xbf16>
    %4 = arith.extf %3 : vector<2x64x32xbf16> to vector<2x64x32xf32>
    %c0_3 = arith.constant 0 : index
    %c0_4 = arith.constant 0 : index
    %5 = vector.load %arg6[%c0_3, %c0_4] : memref<2x32xf32, #tpu.memory_space<vmem>>, vector<2x32xf32>
    %cst = arith.constant dense<0.000000e+00> : vector<2x32xf32>
    %6 = vector.multi_reduction <add>, %4, %cst [1] : vector<2x64x32xf32> to vector<2x32xf32>
    %7 = arith.addf %5, %6 : vector<2x32xf32>
    %c0_5 = arith.constant 0 : index
    %c0_6 = arith.constant 0 : index
    %8 = vector.load %arg6[%c0_5, %c0_6] : memref<2x32xf32, #tpu.memory_space<vmem>>, vector<2x32xf32>
    tpu.vector_store %arg6[%c0_5, %c0_6], %7 {strides = array<i32>} : memref<2x32xf32, #tpu.memory_space<vmem>>, vector<2x32xf32>,
    %c0_i32_7 = arith.constant 0 : i32
    %9 = arith.cmpi eq, %arg1, %c0_i32_7 : i32
    %10 = arith.extui %9 : i1 to i32
    %c0_i32_8 = arith.constant 0 : i32
    %11 = arith.cmpi ne, %10, %c0_i32_8 : i32
    scf.if %11 {
      %c0_9 = arith.constant 0 : index
      %c0_10 = arith.constant 0 : index
      %12 = vector.load %arg6[%c0_9, %c0_10] : memref<2x32xf32, #tpu.memory_space<vmem>>, vector<2x32xf32>
      %cst_11 = arith.constant 1.562500e-02 : f32
      %13 = vector.broadcast %cst_11 : f32 to vector<2x32xf32>
      %14 = arith.mulf %12, %13 : vector<2x32xf32>
      %15 = arith.truncf %14 : vector<2x32xf32> to vector<2x32xbf16>
      %c0_12 = arith.constant 0 : index
      %c0_13 = arith.constant 0 : index
      %16 = vector.load %arg3[%c0_12, %c0_13] : memref<32x128xbf16, #tpu.memory_space<vmem>>, vector<32x128xbf16>
      %cst_14 = arith.constant dense<0.000000e+00> : vector<2x128xf32>
      %17 = tpu.matmul %15, %16, %cst_14 {dimension_numbers = #tpu.dot_dimension_numbers<[1], [0], [0], [1], [0, 0, 1, 1], [], []>} : vector<2x32xbf16>, vector<32x128xbf16>, vector<2x128xf32> -> vector<2x128xf32>
      %c0_15 = arith.constant 0 : index
      %c0_16 = arith.constant 0 : index
      %18 = vector.load %arg4[%c0_15, %c0_16] : memref<1x128xf32, #tpu.memory_space<vmem>>, vector<1x128xf32>
      %19 = vector.broadcast %18 : vector<1x128xf32> to vector<2x128xf32>
      %20 = arith.addf %17, %19 : vector<2x128xf32>
      %c0_17 = arith.constant 0 : index
      %c0_18 = arith.constant 0 : index
      %21 = vector.load %arg5[%c0_17, %c0_18] : memref<2x128xf32, #tpu.memory_space<vmem>>, vector<2x128xf32>
      tpu.vector_store %arg5[%c0_17, %c0_18], %20 {strides = array<i32>} : memref<2x128xf32, #tpu.memory_space<vmem>>, vector<2x128xf32>,
    } else {
    }
    return
  }
  func.func @transform_0(%arg0: i32, %arg1: i32) -> (i32, i32, i32) {
    %c0_i32 = arith.constant 0 : i32
    %c0_i32_0 = arith.constant 0 : i32
    return %arg0, %arg1, %c0_i32 : i32, i32, i32
  }
  func.func @transform_1(%arg0: i32, %arg1: i32) -> (i32, i32) {
    %c0_i32 = arith.constant 0 : i32
    %c0_i32_0 = arith.constant 0 : i32
    %c0_i32_1 = arith.constant 0 : i32
    return %c0_i32, %c0_i32_0 : i32, i32
  }
  func.func @transform_2(%arg0: i32, %arg1: i32) -> (i32, i32) {
    %c0_i32 = arith.constant 0 : i32
    %c0_i32_0 = arith.constant 0 : i32
    %c0_i32_1 = arith.constant 0 : i32
    return %c0_i32, %c0_i32_0 : i32, i32
  }
  func.func @transform_3(%arg0: i32, %arg1: i32) -> (i32, i32) {
    %c0_i32 = arith.constant 0 : i32
    %c0_i32_0 = arith.constant 0 : i32
    return %arg0, %c0_i32 : i32, i32
  }
}

module attributes {stable_mosaic.version = 11 : i64} {
  func.func @pool_head_kernel(%arg0: i32, %arg1: i32, %arg2: memref<2x64x32xbf16, #tpu.memory_space<vmem>>, %arg3: memref<32x128xbf16, #tpu.memory_space<vmem>>, %arg4: memref<1x128xf32, #tpu.memory_space<vmem>>, %arg5: memref<2x128xf32, #tpu.memory_space<vmem>>, %arg6: memref<2x32xf32, #tpu.memory_space<vmem>>) attributes {dimension_semantics = [#tpu.dimension_semantics<parallel>, #tpu.dimension_semantics<arbitrary>], iteration_bounds = array<i64: 1, 1>, scalar_prefetch = 0 : i64, scratch_operands = 1 : i64, tpu.core_type = #tpu.core_type<tc>, window_params = [{transform_indices = @transform_0, window_bounds = array<i64: 2, 64, 32>}, {pipeline_mode = #tpu.pipeline_mode<synchronous>, transform_indices = @transform_1, window_bounds = array<i64: 32, 128>}, {pipeline_mode = #tpu.pipeline_mode<synchronous>, transform_indices = @transform_2, window_bounds = array<i64: 1, 128>}, {transform_indices = @transform_3, window_bounds = array<i64: 2, 128>}]} {
    %c0_i32 = arith.constant 0 : i32
    %0 = arith.cmpi eq, %arg1, %c0_i32 : i32
    %1 = arith.extui %0 : i1 to i32
    %c0_i32_0 = arith.constant 0 : i32
    %2 = arith.cmpi ne, %1, %c0_i32_0 : i32
    scf.if %2 {
      %cst_9 = arith.constant 0.000000e+00 : f32
      %12 = vector.broadcast %cst_9 : f32 to vector<2x32xf32>
      %c0_10 = arith.constant 0 : index
      %c0_11 = arith.constant 0 : index
      %13 = vector.load %arg6[%c0_10, %c0_11] : memref<2x32xf32, #tpu.memory_space<vmem>>, vector<2x32xf32>
      tpu.vector_store %arg6[%c0_10, %c0_11], %12 {strides = array<i32>} : memref<2x32xf32, #tpu.memory_space<vmem>>, vector<2x32xf32>,
    } else {
    }
    %c0 = arith.constant 0 : index
    %c0_1 = arith.constant 0 : index
    %c0_2 = arith.constant 0 : index
    %3 = vector.load %arg2[%c0, %c0_1, %c0_2] : memref<2x64x32xbf16, #tpu.memory_space<vmem>>, vector<2x64x32xbf16>
    %4 = arith.extf %3 : vector<2x64x32xbf16> to vector<2x64x32xf32>
    %c0_3 = arith.constant 0 : index
    %c0_4 = arith.constant 0 : index
    %5 = vector.load %arg6[%c0_3, %c0_4] : memref<2x32xf32, #tpu.memory_space<vmem>>, vector<2x32xf32>
    %cst = arith.constant dense<0.000000e+00> : vector<2x32xf32>
    %6 = vector.multi_reduction <add>, %4, %cst [1] : vector<2x64x32xf32> to vector<2x32xf32>
    %7 = arith.addf %5, %6 : vector<2x32xf32>
    %c0_5 = arith.constant 0 : index
    %c0_6 = arith.constant 0 : index
    %8 = vector.load %arg6[%c0_5, %c0_6] : memref<2x32xf32, #tpu.memory_space<vmem>>, vector<2x32xf32>
    tpu.vector_store %arg6[%c0_5, %c0_6], %7 {strides = array<i32>} : memref<2x32xf32, #tpu.memory_space<vmem>>, vector<2x32xf32>,
    %c0_i32_7 = arith.constant 0 : i32
    %9 = arith.cmpi eq, %arg1, %c0_i32_7 : i32
    %10 = arith.extui %9 : i1 to i32
    %c0_i32_8 = arith.constant 0 : i32
    %11 = arith.cmpi ne, %10, %c0_i32_8 : i32
    scf.if %11 {
      %c0_9 = arith.constant 0 : index
      %c0_10 = arith.constant 0 : index
      %12 = vector.load %arg6[%c0_9, %c0_10] : memref<2x32xf32, #tpu.memory_space<vmem>>, vector<2x32xf32>
      %cst_11 = arith.constant 1.562500e-02 : f32
      %13 = vector.broadcast %cst_11 : f32 to vector<2x32xf32>
      %14 = arith.mulf %12, %13 : vector<2x32xf32>
      %15 = arith.truncf %14 : vector<2x32xf32> to vector<2x32xbf16>
      %c0_12 = arith.constant 0 : index
      %c0_13 = arith.constant 0 : index
      %16 = vector.load %arg3[%c0_12, %c0_13] : memref<32x128xbf16, #tpu.memory_space<vmem>>, vector<32x128xbf16>
      %cst_14 = arith.constant dense<0.000000e+00> : vector<2x128xf32>
      %17 = tpu.matmul %15, %16, %cst_14 {dimension_numbers = #tpu.dot_dimension_numbers<[1], [0], [0], [1], [0, 0, 1, 1], [], []>} : vector<2x32xbf16>, vector<32x128xbf16>, vector<2x128xf32> -> vector<2x128xf32>
      %c0_15 = arith.constant 0 : index
      %c0_16 = arith.constant 0 : index
      %18 = vector.load %arg4[%c0_15, %c0_16] : memref<1x128xf32, #tpu.memory_space<vmem>>, vector<1x128xf32>
      %19 = vector.broadcast %18 : vector<1x128xf32> to vector<2x128xf32>
      %20 = arith.addf %17, %19 : vector<2x128xf32>
      %c0_17 = arith.constant 0 : index
      %c0_18 = arith.constant 0 : index
      %21 = vector.load %arg5[%c0_17, %c0_18] : memref<2x128xf32, #tpu.memory_space<vmem>>, vector<2x128xf32>
      tpu.vector_store %arg5[%c0_17, %c0_18], %20 {strides = array<i32>} : memref<2x128xf32, #tpu.memory_space<vmem>>, vector<2x128xf32>,
    } else {
    }
    return
  }
  func.func @transform_0(%arg0: i32, %arg1: i32) -> (i32, i32, i32) {
    %c0_i32 = arith.constant 0 : i32
    %c0_i32_0 = arith.constant 0 : i32
    return %arg0, %arg1, %c0_i32 : i32, i32, i32
  }
  func.func @transform_1(%arg0: i32, %arg1: i32) -> (i32, i32) {
    %c0_i32 = arith.constant 0 : i32
    %c0_i32_0 = arith.constant 0 : i32
    %c0_i32_1 = arith.constant 0 : i32
    return %c0_i32, %c0_i32_0 : i32, i32
  }
  func.func @transform_2(%arg0: i32, %arg1: i32) -> (i32, i32) {
    %c0_i32 = arith.constant 0 : i32
    %c0_i32_0 = arith.constant 0 : i32
    %c0_i32_1 = arith.constant 0 : i32
    return %c0_i32, %c0_i32_0 : i32, i32
  }
  func.func @transform_3(%arg0: i32, %arg1: i32) -> (i32, i32) {
    %c0_i32 = arith.constant 0 : i32
    %c0_i32_0 = arith.constant 0 : i32
    return %arg0, %c0_i32 : i32, i32
  }
}

</mosaic_0001>

<llo_original>
// kernel: tpu_custom_call.1
$region0: #{tpu_custom_call.1}
  #allocation0 [shape = 'u32[]', space=smem, size = 0x4, offset = 0x4, fixed_abs, tag = 'smem constant byte address 0x4 - core index']
  #allocation1 [shape = 'u32[144,128]{1,0:T(1,128)}', space=vmem, size = 0x12000, scoped, tag = 'internal scratch']
  #allocation2 [shape = 'f32[2,32]{1,0:T(2,128)}', space=vmem, size = 0x400, scoped, tag = 'scratch operand']
  %s0 = inlined_call_operand.vmem [shape: bf16[2,64,32], index: 0, kind: input, shape index: {}]
  %s1 = inlined_call_operand.vmem [shape: bf16[32,128], index: 1, kind: input, shape index: {}]
  %s2 = inlined_call_operand.vmem [shape: f32[1,128], index: 2, kind: input, shape index: {}]
  %s3 = inlined_call_operand.hbm [shape: f32[2,128], index: 3, kind: output, shape index: {}]
  %s4 = sld [smem:[#allocation0]]
  $region30: #{tpu_custom_call.1} parent=0
    _
  %s6 = ssub.s32 1, %s4
  %s7 = scalar_select 0, %s6, %s4
  $region1: #{tpu_custom_call.1} parent=0
    #allocation3 [shape = 'u8[1024]{0}', space=vmem, size = 0x400, scoped, tag = 'output window, operand 0, single buffered']
    #allocation4 [shape = 's32[1]{0}', space=sflag, size = 0x4, scoped, tag = 'scoped memory for tpu_custom_call.1']
    %8 = vsyncpa [#allocation4], 0
    // Predicated region
    $region2: #{tpu_custom_call.1} parent=1 // pred_check
      _
    $region3: #{tpu_custom_call.1} parent=1 // pred_check_branch
      %10 = sbr.rel (0) target = $region5
    $region4: #{tpu_custom_call.1} parent=1 // pred_region
      _
    $region5: #{tpu_custom_call.1} parent=1 // pred_fallthru
      _
    // Predicated region
    $region6: #{tpu_custom_call.1} parent=1 // pred_check
      _
    $region7: #{tpu_custom_call.1} parent=1 // pred_check_branch
      %12 = sbr.rel (0) target = $region9
    $region8: #{tpu_custom_call.1} parent=1 // pred_region
      _
    $region9: #{tpu_custom_call.1} parent=1 // pred_fallthru
      _
    // Predicated region
    $region10: #{tpu_custom_call.1} parent=1 // pred_check
      _
    $region11: #{tpu_custom_call.1} parent=1 // pred_check_branch
      %14 = sbr.rel (0) target = $region13
    $region12: #{tpu_custom_call.1} parent=1 // pred_region
      _
    $region13: #{tpu_custom_call.1} parent=1 // pred_fallthru
      _
    %p16 = scmp.eq.s32.totalorder 0, 0
    // Predicated region
    $region14: #{tpu_custom_call.1} parent=1 // pred_check
      %p17 = pneg %p16
    $region15: #{tpu_custom_call.1} parent=1 // pred_check_branch
      %19 = sbr.rel (%p17) target = $region17
    $region16: #{tpu_custom_call.1} parent=1 // pred_region
      %vm20 = vcmask 254976
      %21 = vst.msk [vmem:[#allocation2] sm:$0x3] %vm20, 0.0
    $region17: #{tpu_custom_call.1} parent=1 // pred_fallthru
      _
    %v22 = vld [vmem:[%s0] sm:$0xf]
    %v23 = vld [vmem:[%s0 + $0x4] sm:$0xf]
    %v24 = vld [vmem:[%s0 + $0x8] sm:$0xf]
    %v25 = vld [vmem:[%s0 + $0xc] sm:$0xf]
    %v26 = vld [vmem:[%s0 + $0x10] sm:$0xf]
    %v27 = vld [vmem:[%s0 + $0x14] sm:$0xf]
    %v28 = vld [vmem:[%s0 + $0x18] sm:$0xf]
    %v29 = vld [vmem:[%s0 + $0x1c] sm:$0xf]
    %v30 = vld [vmem:[%s0 + $0x20] sm:$0xf]
    %v31 = vld [vmem:[%s0 + $0x24] sm:$0xf]
    %v32 = vld [vmem:[%s0 + $0x28] sm:$0xf]
    %v33 = vld [vmem:[%s0 + $0x2c] sm:$0xf]
    %v34 = vld [vmem:[%s0 + $0x30] sm:$0xf]
    %v35 = vld [vmem:[%s0 + $0x34] sm:$0xf]
    %v36 = vld [vmem:[%s0 + $0x38] sm:$0xf]
    %v37 = vld [vmem:[%s0 + $0x3c] sm:$0xf]
    %v38 = vunpack.c.l.bf16 %v22
    %v39 = vunpack.c.l.bf16 %v23
    %v40 = vunpack.c.l.bf16 %v24
    %v41 = vunpack.c.l.bf16 %v25
    %v42 = vunpack.c.l.bf16 %v26
    %v43 = vunpack.c.l.bf16 %v27
    %v44 = vunpack.c.l.bf16 %v28
    %v45 = vunpack.c.l.bf16 %v29
    %v46 = vunpack.c.l.bf16 %v30
    %v47 = vunpack.c.l.bf16 %v31
    %v48 = vunpack.c.l.bf16 %v32
    %v49 = vunpack.c.l.bf16 %v33
    %v50 = vunpack.c.l.bf16 %v34
    %v51 = vunpack.c.l.bf16 %v35
    %v52 = vunpack.c.l.bf16 %v36
    %v53 = vunpack.c.l.bf16 %v37
    %v54 = vld [vmem:[#allocation2] sm:$0x3]
    %vm55 = vcmask 261120
    %v56 = vsel %vm55, %v38, 0.0
    %v57 = vsel %vm55, %v39, 0.0
    %v58 = vadd.f32 %v56, %v57
    %v59 = vsel %vm55, %v40, 0.0
    %v60 = vadd.f32 %v58, %v59
    %v61 = vsel %vm55, %v41, 0.0
    %v62 = vadd.f32 %v60, %v61
    %v63 = vsel %vm55, %v42, 0.0
    %v64 = vadd.f32 %v62, %v63
    %v65 = vsel %vm55, %v43, 0.0
    %v66 = vadd.f32 %v64, %v65
    %v67 = vsel %vm55, %v44, 0.0
    %v68 = vadd.f32 %v66, %v67
    %v69 = vsel %vm55, %v45, 0.0
    %v70 = vadd.f32 %v68, %v69
    %v71 = vrot.slane %v70, 4
    %v72 = vadd.f32 %v70, %v71
    %v73 = vrot.slane %v72, 2
    %v74 = vadd.f32 %v72, %v73
    %v75 = vrot.slane %v74, 1
    %v76 = vadd.f32 %v74, %v75
    %v77 = vsel %vm55, %v46, 0.0
    %v78 = vsel %vm55, %v47, 0.0
    %v79 = vadd.f32 %v77, %v78
    %v80 = vsel %vm55, %v48, 0.0
    %v81 = vadd.f32 %v79, %v80
    %v82 = vsel %vm55, %v49, 0.0
    %v83 = vadd.f32 %v81, %v82
    %v84 = vsel %vm55, %v50, 0.0
    %v85 = vadd.f32 %v83, %v84
    %v86 = vsel %vm55, %v51, 0.0
    %v87 = vadd.f32 %v85, %v86
    %v88 = vsel %vm55, %v52, 0.0
    %v89 = vadd.f32 %v87, %v88
    %v90 = vsel %vm55, %v53, 0.0
    %v91 = vadd.f32 %v89, %v90
    %v92 = vrot.slane %v91, 4
    %v93 = vadd.f32 %v91, %v92
    %v94 = vrot.slane %v93, 2
    %v95 = vadd.f32 %v93, %v94
    %v96 = vrot.slane %v95, 1
    %v97 = vadd.f32 %v95, %v96
    %vm100 = vcmask 1041409
    %v101 = vsel %vm100, %v97, %v76
    %v103 = vadd.f32 %v54, %v101
    %vm104 = vcmask 254976
    %105 = vst.msk [vmem:[#allocation2] sm:$0x3] %vm104, %v103
    // Predicated region
    $region18: #{tpu_custom_call.1} parent=1 // pred_check
      %p106 = pneg %p16
    $region19: #{tpu_custom_call.1} parent=1 // pred_check_branch
      %108 = sbr.rel (%p106) target = $region21
    $region20: #{tpu_custom_call.1} parent=1 // pred_region
      %v109 = vld [vmem:[#allocation2] sm:$0x3]
      %v110 = vmul.f32 %v109, 0.015625
      %v111 = vpack.c.bf16 %v110, %v110
      %v112 = vld [vmem:[%s1] sm:$0xf]
      %v113 = vld [vmem:[%s1 + $0x4] sm:$0xf]
      %v114 = vld [vmem:[%s1 + $0x8] sm:$0xf]
      %v115 = vld [vmem:[%s1 + $0xc] sm:$0xf]
      %v116 = vld [vmem:[%s2] sm:$0x1]
      %v118 = vlaneseq
      %v119 = vshrl.u32 %v118, 7
      %v120 = vsub.s32 0, %v119
      %v121 = vrot.slane %v116, %v120
      %v127 = vunpack.c.l.b16 %v112
      %v128 = vunpack.c.l.b16 %v113
      %v129 = vunpack.c.l.b16 %v114
      %v130 = vunpack.c.l.b16 %v115
      %v131 = vpack.c.b16 %v128, %v127
      %v132 = vpack.c.b16 %v130, %v129
      %v136 = vsel %vm55, %v111, 0
      %138 = vmatprep.subr.bf16.mxu0 0
      %139 = vmatpush1.bf16.msra.mxu0 %v131
      %140 = vmatprep.subr.bf16.mxu0 0
      %141 = vmatpush1.bf16.msra.mxu0 %v132
      %142 = vmatprep.subr.bf16.mxu0 0
      %143 = vmatpush1.bf16.msra.mxu0 0
      %144 = vmatprep.subr.bf16.mxu0 0
      %145 = vmatpush1.bf16.msra.mxu0 0
      %146 = vmatprep.subr.bf16.mxu0 0
      %147 = vmatpush1.bf16.msra.mxu0 0
      %148 = vmatprep.subr.bf16.mxu0 0
      %149 = vmatpush1.bf16.msra.mxu0 0
      %150 = vmatprep.subr.bf16.mxu0 0
      %151 = vmatpush1.bf16.msra.mxu0 0
      %152 = vmatprep.subr.bf16.mxu0 0
      %153 = vmatpush1.bf16.msra.mxu0 0
      %154 = vmatprep.subr.bf16.mxu0 0
      %155 = vmatpush1.bf16.msra.mxu0 0
      %156 = vmatprep.subr.bf16.mxu0 0
      %157 = vmatpush1.bf16.msra.mxu0 0
      %158 = vmatprep.subr.bf16.mxu0 0
      %159 = vmatpush1.bf16.msra.mxu0 0
      %160 = vmatprep.subr.bf16.mxu0 0
      %161 = vmatpush1.bf16.msra.mxu0 0
      %162 = vmatprep.subr.bf16.mxu0 0
      %163 = vmatpush1.bf16.msra.mxu0 0
      %164 = vmatprep.subr.bf16.mxu0 0
      %165 = vmatpush1.bf16.msra.mxu0 0
      %166 = vmatprep.subr.bf16.mxu0 0
      %167 = vmatpush1.bf16.msra.mxu0 0
      %168 = vmatprep.subr.bf16.mxu0 0
      %169 = vmatpush1.bf16.msra.mxu0 0
      %170 = vmatprep.mubr.bf16.mxu0 0
      %171 = vmatmul.mubr.bf16.gmra.mrb[0].mxu0 %v136
      %v172 = vpop.f32.mrb[0].mxu0
      %v173 = vadd.f32 %v121, %v172
      %v174 = vpop.f32.mrb[0].mxu0
      %v175 = vpop.f32.mrb[0].mxu0
      %v176 = vpop.f32.mrb[0].mxu0
      %177 = vdwg.mxu0
      %178 = vst [vmem:[#allocation3] sm:$0x3] %v173
    $region21: #{tpu_custom_call.1} parent=1 // pred_fallthru
      _
    // Predicated region
    $region22: #{tpu_custom_call.1} parent=1 // pred_check
      _
    $region23: #{tpu_custom_call.1} parent=1 // pred_check_branch
      %180 = sbr.rel (0) target = $region25
    $region24: #{tpu_custom_call.1} parent=1 // pred_region
      %s182 = ssub.s32 32, 32
      %183 = vsyncadd [#allocation4], %s182
      %s185 = sshll.u32 [#allocation3], 4
      %s186 = int_to_ptr.vmem [resolvable:$true] %s185
      %188 = dma.vmem_to_hbm [thread:$0]  %s186, 32, %s3, [#allocation4]
    $region25: #{tpu_custom_call.1} parent=1 // pred_fallthru
      _
    // Predicated region
    $region26: #{tpu_custom_call.1} parent=1 // pred_check
      _
    $region27: #{tpu_custom_call.1} parent=1 // pred_check_branch
      %190 = sbr.rel (0) target = $region29
    $region28: #{tpu_custom_call.1} parent=1 // pred_region
      %191 = dma.done [#allocation4], 32
    $region29: #{tpu_custom_call.1} parent=1 // pred_fallthru
      _
    %192 = vsyncpa [#allocation4], 1

// kernel: tpu_custom_call.1
$region0: #{tpu_custom_call.1}
  #allocation0 [shape = 'u32[]', space=smem, size = 0x4, offset = 0x4, fixed_abs, tag = 'smem constant byte address 0x4 - core index']
  #allocation1 [shape = 'u32[144,128]{1,0:T(1,128)}', space=vmem, size = 0x12000, scoped, tag = 'internal scratch']
  #allocation2 [shape = 'f32[2,32]{1,0:T(2,128)}', space=vmem, size = 0x400, scoped, tag = 'scratch operand']
  %s0 = inlined_call_operand.vmem [shape: bf16[2,64,32], index: 0, kind: input, shape index: {}]
  %s1 = inlined_call_operand.vmem [shape: bf16[32,128], index: 1, kind: input, shape index: {}]
  %s2 = inlined_call_operand.vmem [shape: f32[1,128], index: 2, kind: input, shape index: {}]
  %s3 = inlined_call_operand.hbm [shape: f32[2,128], index: 3, kind: output, shape index: {}]
  %s4 = sld [smem:[#allocation0]]
  $region30: #{tpu_custom_call.1} parent=0
    _
  %s6 = ssub.s32 1, %s4
  %s7 = scalar_select 0, %s6, %s4
  $region1: #{tpu_custom_call.1} parent=0
    #allocation3 [shape = 'u8[1024]{0}', space=vmem, size = 0x400, scoped, tag = 'output window, operand 0, single buffered']
    #allocation4 [shape = 's32[1]{0}', space=sflag, size = 0x4, scoped, tag = 'scoped memory for tpu_custom_call.1']
    %8 = vsyncpa [#allocation4], 0
    // Predicated region
    $region2: #{tpu_custom_call.1} parent=1 // pred_check
      _
    $region3: #{tpu_custom_call.1} parent=1 // pred_check_branch
      %10 = sbr.rel (0) target = $region5
    $region4: #{tpu_custom_call.1} parent=1 // pred_region
      _
    $region5: #{tpu_custom_call.1} parent=1 // pred_fallthru
      _
    // Predicated region
    $region6: #{tpu_custom_call.1} parent=1 // pred_check
      _
    $region7: #{tpu_custom_call.1} parent=1 // pred_check_branch
      %12 = sbr.rel (0) target = $region9
    $region8: #{tpu_custom_call.1} parent=1 // pred_region
      _
    $region9: #{tpu_custom_call.1} parent=1 // pred_fallthru
      _
    // Predicated region
    $region10: #{tpu_custom_call.1} parent=1 // pred_check
      _
    $region11: #{tpu_custom_call.1} parent=1 // pred_check_branch
      %14 = sbr.rel (0) target = $region13
    $region12: #{tpu_custom_call.1} parent=1 // pred_region
      _
    $region13: #{tpu_custom_call.1} parent=1 // pred_fallthru
      _
    %p16 = scmp.eq.s32.totalorder 0, 0
    // Predicated region
    $region14: #{tpu_custom_call.1} parent=1 // pred_check
      %p17 = pneg %p16
    $region15: #{tpu_custom_call.1} parent=1 // pred_check_branch
      %19 = sbr.rel (%p17) target = $region17
    $region16: #{tpu_custom_call.1} parent=1 // pred_region
      %vm20 = vcmask 254976
      %21 = vst.msk [vmem:[#allocation2] sm:$0x3] %vm20, 0.0
    $region17: #{tpu_custom_call.1} parent=1 // pred_fallthru
      _
    %v22 = vld [vmem:[%s0] sm:$0xf]
    %v23 = vld [vmem:[%s0 + $0x4] sm:$0xf]
    %v24 = vld [vmem:[%s0 + $0x8] sm:$0xf]
    %v25 = vld [vmem:[%s0 + $0xc] sm:$0xf]
    %v26 = vld [vmem:[%s0 + $0x10] sm:$0xf]
    %v27 = vld [vmem:[%s0 + $0x14] sm:$0xf]
    %v28 = vld [vmem:[%s0 + $0x18] sm:$0xf]
    %v29 = vld [vmem:[%s0 + $0x1c] sm:$0xf]
    %v30 = vld [vmem:[%s0 + $0x20] sm:$0xf]
    %v31 = vld [vmem:[%s0 + $0x24] sm:$0xf]
    %v32 = vld [vmem:[%s0 + $0x28] sm:$0xf]
    %v33 = vld [vmem:[%s0 + $0x2c] sm:$0xf]
    %v34 = vld [vmem:[%s0 + $0x30] sm:$0xf]
    %v35 = vld [vmem:[%s0 + $0x34] sm:$0xf]
    %v36 = vld [vmem:[%s0 + $0x38] sm:$0xf]
    %v37 = vld [vmem:[%s0 + $0x3c] sm:$0xf]
    %v38 = vunpack.c.l.bf16 %v22
    %v39 = vunpack.c.l.bf16 %v23
    %v40 = vunpack.c.l.bf16 %v24
    %v41 = vunpack.c.l.bf16 %v25
    %v42 = vunpack.c.l.bf16 %v26
    %v43 = vunpack.c.l.bf16 %v27
    %v44 = vunpack.c.l.bf16 %v28
    %v45 = vunpack.c.l.bf16 %v29
    %v46 = vunpack.c.l.bf16 %v30
    %v47 = vunpack.c.l.bf16 %v31
    %v48 = vunpack.c.l.bf16 %v32
    %v49 = vunpack.c.l.bf16 %v33
    %v50 = vunpack.c.l.bf16 %v34
    %v51 = vunpack.c.l.bf16 %v35
    %v52 = vunpack.c.l.bf16 %v36
    %v53 = vunpack.c.l.bf16 %v37
    %v54 = vld [vmem:[#allocation2] sm:$0x3]
    %vm55 = vcmask 261120
    %v56 = vsel %vm55, %v38, 0.0
    %v57 = vsel %vm55, %v39, 0.0
    %v58 = vadd.f32 %v56, %v57
    %v59 = vsel %vm55, %v40, 0.0
    %v60 = vadd.f32 %v58, %v59
    %v61 = vsel %vm55, %v41, 0.0
    %v62 = vadd.f32 %v60, %v61
    %v63 = vsel %vm55, %v42, 0.0
    %v64 = vadd.f32 %v62, %v63
    %v65 = vsel %vm55, %v43, 0.0
    %v66 = vadd.f32 %v64, %v65
    %v67 = vsel %vm55, %v44, 0.0
    %v68 = vadd.f32 %v66, %v67
    %v69 = vsel %vm55, %v45, 0.0
    %v70 = vadd.f32 %v68, %v69
    %v71 = vrot.slane %v70, 4
    %v72 = vadd.f32 %v70, %v71
    %v73 = vrot.slane %v72, 2
    %v74 = vadd.f32 %v72, %v73
    %v75 = vrot.slane %v74, 1
    %v76 = vadd.f32 %v74, %v75
    %v77 = vsel %vm55, %v46, 0.0
    %v78 = vsel %vm55, %v47, 0.0
    %v79 = vadd.f32 %v77, %v78
    %v80 = vsel %vm55, %v48, 0.0
    %v81 = vadd.f32 %v79, %v80
    %v82 = vsel %vm55, %v49, 0.0
    %v83 = vadd.f32 %v81, %v82
    %v84 = vsel %vm55, %v50, 0.0
    %v85 = vadd.f32 %v83, %v84
    %v86 = vsel %vm55, %v51, 0.0
    %v87 = vadd.f32 %v85, %v86
    %v88 = vsel %vm55, %v52, 0.0
    %v89 = vadd.f32 %v87, %v88
    %v90 = vsel %vm55, %v53, 0.0
    %v91 = vadd.f32 %v89, %v90
    %v92 = vrot.slane %v91, 4
    %v93 = vadd.f32 %v91, %v92
    %v94 = vrot.slane %v93, 2
    %v95 = vadd.f32 %v93, %v94
    %v96 = vrot.slane %v95, 1
    %v97 = vadd.f32 %v95, %v96
    %vm100 = vcmask 1041409
    %v101 = vsel %vm100, %v97, %v76
    %v103 = vadd.f32 %v54, %v101
    %vm104 = vcmask 254976
    %105 = vst.msk [vmem:[#allocation2] sm:$0x3] %vm104, %v103
    // Predicated region
    $region18: #{tpu_custom_call.1} parent=1 // pred_check
      %p106 = pneg %p16
    $region19: #{tpu_custom_call.1} parent=1 // pred_check_branch
      %108 = sbr.rel (%p106) target = $region21
    $region20: #{tpu_custom_call.1} parent=1 // pred_region
      %v109 = vld [vmem:[#allocation2] sm:$0x3]
      %v110 = vmul.f32 %v109, 0.015625
      %v111 = vpack.c.bf16 %v110, %v110
      %v112 = vld [vmem:[%s1] sm:$0xf]
      %v113 = vld [vmem:[%s1 + $0x4] sm:$0xf]
      %v114 = vld [vmem:[%s1 + $0x8] sm:$0xf]
      %v115 = vld [vmem:[%s1 + $0xc] sm:$0xf]
      %v116 = vld [vmem:[%s2] sm:$0x1]
      %v118 = vlaneseq
      %v119 = vshrl.u32 %v118, 7
      %v120 = vsub.s32 0, %v119
      %v121 = vrot.slane %v116, %v120
      %v127 = vunpack.c.l.b16 %v112
      %v128 = vunpack.c.l.b16 %v113
      %v129 = vunpack.c.l.b16 %v114
      %v130 = vunpack.c.l.b16 %v115
      %v131 = vpack.c.b16 %v128, %v127
      %v132 = vpack.c.b16 %v130, %v129
      %v136 = vsel %vm55, %v111, 0
      %138 = vmatprep.subr.bf16.mxu0 0
      %139 = vmatpush1.bf16.msra.mxu0 %v131
      %140 = vmatprep.subr.bf16.mxu0 0
      %141 = vmatpush1.bf16.msra.mxu0 %v132
      %142 = vmatprep.subr.bf16.mxu0 0
      %143 = vmatpush1.bf16.msra.mxu0 0
      %144 = vmatprep.subr.bf16.mxu0 0
      %145 = vmatpush1.bf16.msra.mxu0 0
      %146 = vmatprep.subr.bf16.mxu0 0
      %147 = vmatpush1.bf16.msra.mxu0 0
      %148 = vmatprep.subr.bf16.mxu0 0
      %149 = vmatpush1.bf16.msra.mxu0 0
      %150 = vmatprep.subr.bf16.mxu0 0
      %151 = vmatpush1.bf16.msra.mxu0 0
      %152 = vmatprep.subr.bf16.mxu0 0
      %153 = vmatpush1.bf16.msra.mxu0 0
      %154 = vmatprep.subr.bf16.mxu0 0
      %155 = vmatpush1.bf16.msra.mxu0 0
      %156 = vmatprep.subr.bf16.mxu0 0
      %157 = vmatpush1.bf16.msra.mxu0 0
      %158 = vmatprep.subr.bf16.mxu0 0
      %159 = vmatpush1.bf16.msra.mxu0 0
      %160 = vmatprep.subr.bf16.mxu0 0
      %161 = vmatpush1.bf16.msra.mxu0 0
      %162 = vmatprep.subr.bf16.mxu0 0
      %163 = vmatpush1.bf16.msra.mxu0 0
      %164 = vmatprep.subr.bf16.mxu0 0
      %165 = vmatpush1.bf16.msra.mxu0 0
      %166 = vmatprep.subr.bf16.mxu0 0
      %167 = vmatpush1.bf16.msra.mxu0 0
      %168 = vmatprep.subr.bf16.mxu0 0
      %169 = vmatpush1.bf16.msra.mxu0 0
      %170 = vmatprep.mubr.bf16.mxu0 0
      %171 = vmatmul.mubr.bf16.gmra.mrb[0].mxu0 %v136
      %v172 = vpop.f32.mrb[0].mxu0
      %v173 = vadd.f32 %v121, %v172
      %v174 = vpop.f32.mrb[0].mxu0
      %v175 = vpop.f32.mrb[0].mxu0
      %v176 = vpop.f32.mrb[0].mxu0
      %177 = vdwg.mxu0
      %178 = vst [vmem:[#allocation3] sm:$0x3] %v173
    $region21: #{tpu_custom_call.1} parent=1 // pred_fallthru
      _
    // Predicated region
    $region22: #{tpu_custom_call.1} parent=1 // pred_check
      _
    $region23: #{tpu_custom_call.1} parent=1 // pred_check_branch
      %180 = sbr.rel (0) target = $region25
    $region24: #{tpu_custom_call.1} parent=1 // pred_region
      %s182 = ssub.s32 32, 32
      %183 = vsyncadd [#allocation4], %s182
      %s185 = sshll.u32 [#allocation3], 4
      %s186 = int_to_ptr.vmem [resolvable:$true] %s185
      %188 = dma.vmem_to_hbm [thread:$0]  %s186, 32, %s3, [#allocation4]
    $region25: #{tpu_custom_call.1} parent=1 // pred_fallthru
      _
    // Predicated region
    $region26: #{tpu_custom_call.1} parent=1 // pred_check
      _
    $region27: #{tpu_custom_call.1} parent=1 // pred_check_branch
      %190 = sbr.rel (0) target = $region29
    $region28: #{tpu_custom_call.1} parent=1 // pred_region
      %191 = dma.done [#allocation4], 32
    $region29: #{tpu_custom_call.1} parent=1 // pred_fallthru
      _
    %192 = vsyncpa [#allocation4], 1

</llo_original>
